<compile_context>
chip_gen: v5e
topology: v5e:2x2
jax: 0.10.0
libtpu: 0.0.40
codegen_flags: <defaults>
</compile_context>

<pallas_src>
import functools

import jax
import jax.numpy as jnp
from jax.experimental import pallas as pl
from jax.experimental.pallas import tpu as pltpu


def _disc_kernel(f1_ref, f2_ref, w0_ref, small_ref, b1_ref, out_ref, *, mm_dtype):
    # Features may be streamed as bf16; all elementwise math is done in f32
    # (mandatory on v5e, which has no bf16 VPU).
    f1 = f1_ref[...].astype(jnp.float32)
    f2 = f2_ref[...].astype(jnp.float32)

    def mm(a, j):
        # (TB, F) @ (F, H) slab j of W0; bf16 operands, f32 MXU accumulation.
        return jnp.dot(a.astype(mm_dtype), w0_ref[j],
                       preferred_element_type=jnp.float32)

    # cat([f1, f2, |f1-f2|, f1*f2], dim=1) @ W0  ==  sum of four slab-dots
    # (no (TB, 4F) concat materialized in VMEM).
    h = mm(f1, 0) + mm(f2, 1) + mm(jnp.abs(f1 - f2), 2) + mm(f1 * f2, 3)
    h = h + small_ref[0:1, :]                       # b0

    # LayerNorm over hidden dim, eps = 1e-5 (nn.LayerNorm default).
    # Mean-subtract before squaring: var >= 0, matches PyTorch numerics.
    mean = jnp.mean(h, axis=-1, keepdims=True)
    d = h - mean
    var = jnp.mean(d * d, axis=-1, keepdims=True)
    scale = jax.lax.rsqrt(var + 1e-5) * small_ref[1:2, :]     # fold gamma
    h = d * scale + small_ref[2:3, :]                          # + beta

    # ReLU
    h = jnp.maximum(h, 0.0)

    # Head Linear(H, 1): contract H of (1,H) w1 against H of (TB,H) h
    # -> lane-dense (1, TB) row (single small MXU op, unmasked stores).
    w1 = small_ref[3:4, :]
    y = jax.lax.dot_general(w1, h, (((1,), (1,)), ((), ())),
                            preferred_element_type=jnp.float32)
    y = jax.nn.sigmoid(y + b1_ref[0, 0])
    out_ref[...] = y.reshape(out_ref.shape)


def discriminator_forward(feat1, feat2, params, *, block_b=1024,
                          matmul_dtype=jnp.bfloat16, feature_dtype=None):
    """feat1, feat2: (B, F) float32.  Returns (B, 1) float32 in (0, 1).

    block_b:       max batch tile (default 1024; per-step VMEM stays well
                   inside every generation's budget even at F=512).
    matmul_dtype:  MXU operand dtype for the first Linear (bf16 default for
                   full-rate MXU on v5e/v6e/v7x; accumulation is always f32).
    feature_dtype: optional dtype to stream feat1/feat2 in (e.g. bf16 halves
                   the dominant HBM stream); None keeps them as-is.
    """
    B, F = feat1.shape
    w0, b0, gamma, beta, w1, b1 = params
    H = w0.shape[1]
    assert w0.shape == (4 * F, H)

    if feature_dtype is not None:
        feat1 = feat1.astype(feature_dtype)
        feat2 = feat2.astype(feature_dtype)

    # Batch tile: sublane-aligned (8 for f32 features, 16 for bf16), sized so
    # the grid has >= 2 steps whenever B exceeds one tile (so the batch axis
    # can actually be sharded across v7x's 2 TensorCores), capped at block_b.
    sub = 16 if jnp.dtype(feat1.dtype).itemsize < 4 else 8
    TB = -(-(-(-B // 2)) // sub) * sub              # round_up(ceil(B/2), sub)
    TB = max(sub, min(int(block_b), TB))
    num_blocks = pl.cdiv(B, TB)                     # ragged last block is OK

    # Weights: W0 as (4, F, H) slabs (cast once, outside the kernel);
    # b0/gamma/beta/w1 packed into one (4, H) operand; b1 as an SMEM scalar.
    w0_mm = w0.reshape(4, F, H).astype(matmul_dtype)
    small = jnp.concatenate([b0.reshape(1, H), gamma.reshape(1, H),
                             beta.reshape(1, H), w1.reshape(1, H)], axis=0)
    b1_s = b1.reshape(1, 1)

    kernel = functools.partial(_disc_kernel, mm_dtype=matmul_dtype)

    out = pl.pallas_call(
        kernel,
        out_shape=jax.ShapeDtypeStruct((num_blocks, 1, TB), jnp.float32),
        grid=(num_blocks,),
        in_specs=[
            pl.BlockSpec((TB, F), lambda i: (i, 0)),            # feat1 tile
            pl.BlockSpec((TB, F), lambda i: (i, 0)),            # feat2 tile
            pl.BlockSpec((4, F, H), lambda i: (0, 0, 0)),       # W0 slabs
            pl.BlockSpec((4, H), lambda i: (0, 0)),             # b0/g/beta/w1
            pl.BlockSpec(memory_space=pltpu.MemorySpace.SMEM),  # b1 scalar
        ],
        out_specs=pl.BlockSpec((1, 1, TB), lambda i: (i, 0, 0)),
        compiler_params=pltpu.CompilerParams(
            dimension_semantics=("parallel",)),
    )(feat1, feat2, w0_mm, small, b1_s)

    # (num_blocks, 1, TB) -> flat -> drop the (garbage) ragged tail -> (B, 1).
    return out.reshape(-1)[:B].reshape(B, 1)


def init_params(key, ft_in, hidden=128):
    """Deterministic synthetic params mirroring SeqLinear(ft_in*4, [128, 1])."""
    k0, k1, k2, k3 = jax.random.split(key, 4)
    fin0 = 4 * ft_in
    # kaiming_normal_ (fan_in, relu gain): std = sqrt(2 / fan_in)
    w0 = jax.random.normal(k0, (fin0, hidden), jnp.float32) * jnp.sqrt(2.0 / fin0)
    b0 = jax.random.uniform(k1, (1, hidden), jnp.float32,
                            -1.0 / jnp.sqrt(fin0), 1.0 / jnp.sqrt(fin0))
    gamma = jnp.ones((1, hidden), jnp.float32)
    beta = jnp.zeros((1, hidden), jnp.float32)
    w1 = jax.random.normal(k2, (hidden, 1), jnp.float32) * jnp.sqrt(2.0 / hidden)
    b1 = jax.random.uniform(k3, (1, 1), jnp.float32,
                            -1.0 / jnp.sqrt(hidden), 1.0 / jnp.sqrt(hidden))
    return (w0, b0, gamma, beta, w1, b1)


def reference_forward(feat1, feat2, params):
    """Pure-JAX reference of the PyTorch forward (eval mode: dropout = id)."""
    w0, b0, gamma, beta, w1, b1 = params
    x = jnp.concatenate([feat1, feat2, jnp.abs(feat1 - feat2), feat1 * feat2],
                        axis=1)
    h = x @ w0 + b0
    mean = jnp.mean(h, axis=-1, keepdims=True)
    var = jnp.mean((h - mean) ** 2, axis=-1, keepdims=True)
    h = (h - mean) * jax.lax.rsqrt(var + 1e-5) * gamma + beta
    h = jnp.maximum(h, 0.0)
    return jax.nn.sigmoid(h @ w1 + b1)


# TODO(synk): nn.Dropout (p=0.5) is only implemented as eval-mode identity; the
# train-mode Bernoulli mask (pltpu.prng_*) is not wired in.

if __name__ == "__main__":
    key = jax.random.PRNGKey(0)
    kf1, kf2, kp = jax.random.split(key, 3)

    B, F = 16, 64          # small shapes; module default is ft_in=512
    feat1 = jax.random.normal(kf1, (B, F), jnp.float32)
    feat2 = jax.random.normal(kf2, (B, F), jnp.float32)
    params = init_params(kp, F)

    ref = reference_forward(feat1, feat2, params)

    # f32-MXU path: exact parity with the PyTorch-style reference.
    out_f32 = jax.block_until_ready(
        discriminator_forward(feat1, feat2, params, matmul_dtype=jnp.float32))
    assert out_f32.shape == (B, 1)
    assert jnp.allclose(out_f32, ref, atol=1e-5, rtol=1e-5)

    # Default fast path: bf16 MXU operands, f32 accumulation.
    out = jax.block_until_ready(discriminator_forward(feat1, feat2, params))
    assert out.shape == (B, 1)
    assert jnp.all(jnp.isfinite(out))
    assert jnp.allclose(out, ref, atol=2e-2, rtol=2e-2)

    # Ragged batch: ceil-grid with NO host-side pad (last tile partly garbage,
    # sliced off outside).
    Br = 13
    out_r = jax.block_until_ready(
        discriminator_forward(feat1[:Br], feat2[:Br], params,
                              matmul_dtype=jnp.float32))
    assert out_r.shape == (Br, 1)
    assert jnp.allclose(out_r, ref[:Br], atol=1e-5, rtol=1e-5)

    # bf16 feature streaming (halves the dominant HBM stream) + bf16 MXU.
    out_bf = jax.block_until_ready(
        discriminator_forward(feat1, feat2, params,
                              feature_dtype=jnp.bfloat16))
    assert out_bf.shape == (B, 1)
    assert jnp.all(jnp.isfinite(out_bf))
    assert jnp.allclose(out_bf, ref, atol=5e-2, rtol=5e-2)

    print("KERNEL_OK")
</pallas_src>

<mosaic_0001>
module attributes {stable_mosaic.version = 11 : i64} {
  func.func @_disc_kernel(%arg0: i32, %arg1: memref<8x64xf32, #tpu.memory_space<vmem>>, %arg2: memref<8x64xf32, #tpu.memory_space<vmem>>, %arg3: memref<4x64x128xf32, #tpu.memory_space<vmem>>, %arg4: memref<4x128xf32, #tpu.memory_space<vmem>>, %arg5: memref<1x1xf32, #tpu.memory_space<smem>>, %arg6: memref<1x1x8xf32, #tpu.memory_space<vmem>>) attributes {dimension_semantics = [#tpu.dimension_semantics<parallel>], iteration_bounds = array<i64: 2>, scalar_prefetch = 0 : i64, scratch_operands = 0 : i64, tpu.core_type = #tpu.core_type<tc>, window_params = [{transform_indices = @transform_0, window_bounds = array<i64: 8, 64>}, {transform_indices = @transform_1, window_bounds = array<i64: 8, 64>}, {pipeline_mode = #tpu.pipeline_mode<synchronous>, transform_indices = @transform_2, window_bounds = array<i64: 4, 64, 128>}, {pipeline_mode = #tpu.pipeline_mode<synchronous>, transform_indices = @transform_3, window_bounds = array<i64: 4, 128>}, {transform_indices = @transform_4, window_bounds = array<i64: 1, 1>}, {transform_indices = @transform_5, window_bounds = array<i64: 1, 1, 8>}]} {
    %c0 = arith.constant 0 : index
    %c0_0 = arith.constant 0 : index
    %0 = vector.load %arg1[%c0, %c0_0] : memref<8x64xf32, #tpu.memory_space<vmem>>, vector<8x64xf32>
    %c0_1 = arith.constant 0 : index
    %c0_2 = arith.constant 0 : index
    %1 = vector.load %arg2[%c0_1, %c0_2] : memref<8x64xf32, #tpu.memory_space<vmem>>, vector<8x64xf32>
    %c0_3 = arith.constant 0 : index
    %c0_4 = arith.constant 0 : index
    %c0_5 = arith.constant 0 : index
    %2 = vector.load %arg3[%c0_3, %c0_4, %c0_5] : memref<4x64x128xf32, #tpu.memory_space<vmem>>, vector<1x64x128xf32>
    %3 = vector.shape_cast %2 : vector<1x64x128xf32> to vector<64x128xf32>
    %cst = arith.constant dense<0.000000e+00> : vector<8x128xf32>
    %4 = tpu.matmul %0, %3, %cst {dimension_numbers = #tpu.dot_dimension_numbers<[1], [0], [0], [1], [0, 0, 1, 1], [], []>} : vector<8x64xf32>, vector<64x128xf32>, vector<8x128xf32> -> vector<8x128xf32>
    %c1 = arith.constant 1 : index
    %c0_6 = arith.constant 0 : index
    %c0_7 = arith.constant 0 : index
    %5 = vector.load %arg3[%c1, %c0_6, %c0_7] : memref<4x64x128xf32, #tpu.memory_space<vmem>>, vector<1x64x128xf32>
    %6 = vector.shape_cast %5 : vector<1x64x128xf32> to vector<64x128xf32>
    %cst_8 = arith.constant dense<0.000000e+00> : vector<8x128xf32>
    %7 = tpu.matmul %1, %6, %cst_8 {dimension_numbers = #tpu.dot_dimension_numbers<[1], [0], [0], [1], [0, 0, 1, 1], [], []>} : vector<8x64xf32>, vector<64x128xf32>, vector<8x128xf32> -> vector<8x128xf32>
    %8 = arith.addf %4, %7 : vector<8x128xf32>
    %9 = arith.subf %0, %1 : vector<8x64xf32>
    %10 = math.absf %9 : vector<8x64xf32>
    %c2 = arith.constant 2 : index
    %c0_9 = arith.constant 0 : index
    %c0_10 = arith.constant 0 : index
    %11 = vector.load %arg3[%c2, %c0_9, %c0_10] : memref<4x64x128xf32, #tpu.memory_space<vmem>>, vector<1x64x128xf32>
    %12 = vector.shape_cast %11 : vector<1x64x128xf32> to vector<64x128xf32>
    %cst_11 = arith.constant dense<0.000000e+00> : vector<8x128xf32>
    %13 = tpu.matmul %10, %12, %cst_11 {dimension_numbers = #tpu.dot_dimension_numbers<[1], [0], [0], [1], [0, 0, 1, 1], [], []>} : vector<8x64xf32>, vector<64x128xf32>, vector<8x128xf32> -> vector<8x128xf32>
    %14 = arith.addf %8, %13 : vector<8x128xf32>
    %15 = arith.mulf %0, %1 : vector<8x64xf32>
    %c3 = arith.constant 3 : index
    %c0_12 = arith.constant 0 : index
    %c0_13 = arith.constant 0 : index
    %16 = vector.load %arg3[%c3, %c0_12, %c0_13] : memref<4x64x128xf32, #tpu.memory_space<vmem>>, vector<1x64x128xf32>
    %17 = vector.shape_cast %16 : vector<1x64x128xf32> to vector<64x128xf32>
    %cst_14 = arith.constant dense<0.000000e+00> : vector<8x128xf32>
    %18 = tpu.matmul %15, %17, %cst_14 {dimension_numbers = #tpu.dot_dimension_numbers<[1], [0], [0], [1], [0, 0, 1, 1], [], []>} : vector<8x64xf32>, vector<64x128xf32>, vector<8x128xf32> -> vector<8x128xf32>
    %19 = arith.addf %14, %18 : vector<8x128xf32>
    %c0_15 = arith.constant 0 : index
    %c0_16 = arith.constant 0 : index
    %20 = vector.load %arg4[%c0_15, %c0_16] : memref<4x128xf32, #tpu.memory_space<vmem>>, vector<1x128xf32>
    %21 = vector.broadcast %20 : vector<1x128xf32> to vector<8x128xf32>
    %22 = arith.addf %19, %21 : vector<8x128xf32>
    %cst_17 = arith.constant dense<0.000000e+00> : vector<8xf32>
    %23 = vector.multi_reduction <add>, %22, %cst_17 [1] : vector<8x128xf32> to vector<8xf32>
    %24 = vector.shape_cast %23 : vector<8xf32> to vector<8x1xf32>
    %cst_18 = arith.constant 1.280000e+02 : f32
    %25 = vector.broadcast %cst_18 : f32 to vector<8x1xf32>
    %26 = arith.divf %24, %25 : vector<8x1xf32>
    %27 = vector.broadcast %26 : vector<8x1xf32> to vector<8x128xf32>
    %28 = arith.subf %22, %27 : vector<8x128xf32>
    %29 = arith.mulf %28, %28 : vector<8x128xf32>
    %cst_19 = arith.constant dense<0.000000e+00> : vector<8xf32>
    %30 = vector.multi_reduction <add>, %29, %cst_19 [1] : vector<8x128xf32> to vector<8xf32>
    %31 = vector.shape_cast %30 : vector<8xf32> to vector<8x1xf32>
    %cst_20 = arith.constant 1.280000e+02 : f32
    %32 = vector.broadcast %cst_20 : f32 to vector<8x1xf32>
    %33 = arith.divf %31, %32 : vector<8x1xf32>
    %cst_21 = arith.constant 9.99999974E-6 : f32
    %34 = vector.broadcast %cst_21 : f32 to vector<8x1xf32>
    %35 = arith.addf %33, %34 : vector<8x1xf32>
    %36 = math.rsqrt %35 : vector<8x1xf32>
    %c1_22 = arith.constant 1 : index
    %c0_23 = arith.constant 0 : index
    %37 = vector.load %arg4[%c1_22, %c0_23] : memref<4x128xf32, #tpu.memory_space<vmem>>, vector<1x128xf32>
    %38 = vector.broadcast %36 : vector<8x1xf32> to vector<8x128xf32>
    %39 = vector.broadcast %37 : vector<1x128xf32> to vector<8x128xf32>
    %40 = arith.mulf %38, %39 : vector<8x128xf32>
    %41 = arith.mulf %28, %40 : vector<8x128xf32>
    %c2_24 = arith.constant 2 : index
    %c0_25 = arith.constant 0 : index
    %42 = vector.load %arg4[%c2_24, %c0_25] : memref<4x128xf32, #tpu.memory_space<vmem>>, vector<1x128xf32>
    %43 = vector.broadcast %42 : vector<1x128xf32> to vector<8x128xf32>
    %44 = arith.addf %41, %43 : vector<8x128xf32>
    %cst_26 = arith.constant 0.000000e+00 : f32
    %45 = vector.broadcast %cst_26 : f32 to vector<8x128xf32>
    %46 = arith.maximumf %44, %45 : vector<8x128xf32>
    %c3_27 = arith.constant 3 : index
    %c0_28 = arith.constant 0 : index
    %47 = vector.load %arg4[%c3_27, %c0_28] : memref<4x128xf32, #tpu.memory_space<vmem>>, vector<1x128xf32>
    %cst_29 = arith.constant dense<0.000000e+00> : vector<1x8xf32>
    %48 = tpu.matmul %47, %46, %cst_29 {dimension_numbers = #tpu.dot_dimension_numbers<[1], [1], [0], [0], [0, 0, 1, 0], [], []>} : vector<1x128xf32>, vector<8x128xf32>, vector<1x8xf32> -> vector<1x8xf32>
    %c0_30 = arith.constant 0 : index
    %c0_31 = arith.constant 0 : index
    %49 = memref.load %arg5[%c0_30, %c0_31] : memref<1x1xf32, #tpu.memory_space<smem>>
    %50 = vector.broadcast %49 : f32 to vector<1x8xf32>
    %51 = arith.addf %48, %50 : vector<1x8xf32>
    %52 = arith.negf %51 : vector<1x8xf32>
    %53 = math.exp %52 : vector<1x8xf32>
    %cst_32 = arith.constant 1.000000e+00 : f32
    %54 = vector.broadcast %cst_32 : f32 to vector<1x8xf32>
    %55 = arith.addf %54, %53 : vector<1x8xf32>
    %56 = arith.divf %54, %55 : vector<1x8xf32>
    %57 = vector.shape_cast %56 : vector<1x8xf32> to vector<1x1x8xf32>
    %c0_33 = arith.constant 0 : index
    %c0_34 = arith.constant 0 : index
    %c0_35 = arith.constant 0 : index
    %58 = vector.load %arg6[%c0_33, %c0_34, %c0_35] : memref<1x1x8xf32, #tpu.memory_space<vmem>>, vector<1x1x8xf32>
    tpu.vector_store %arg6[%c0_33, %c0_34, %c0_35], %57 {strides = array<i32>} : memref<1x1x8xf32, #tpu.memory_space<vmem>>, vector<1x1x8xf32>,
    return
  }
  func.func @transform_0(%arg0: i32) -> (i32, i32) {
    %c0_i32 = arith.constant 0 : i32
    %c0_i32_0 = arith.constant 0 : i32
    return %arg0, %c0_i32 : i32, i32
  }
  func.func @transform_1(%arg0: i32) -> (i32, i32) {
    %c0_i32 = arith.constant 0 : i32
    %c0_i32_0 = arith.constant 0 : i32
    return %arg0, %c0_i32 : i32, i32
  }
  func.func @transform_2(%arg0: i32) -> (i32, i32, i32) {
    %c0_i32 = arith.constant 0 : i32
    %c0_i32_0 = arith.constant 0 : i32
    %c0_i32_1 = arith.constant 0 : i32
    %c0_i32_2 = arith.constant 0 : i32
    return %c0_i32, %c0_i32_0, %c0_i32_1 : i32, i32, i32
  }
  func.func @transform_3(%arg0: i32) -> (i32, i32) {
    %c0_i32 = arith.constant 0 : i32
    %c0_i32_0 = arith.constant 0 : i32
    %c0_i32_1 = arith.constant 0 : i32
    return %c0_i32, %c0_i32_0 : i32, i32
  }
  func.func @transform_4(%arg0: i32) -> (i32, i32) {
    %c0_i32 = arith.constant 0 : i32
    %c0_i32_0 = arith.constant 0 : i32
    %c0_i32_1 = arith.constant 0 : i32
    return %c0_i32, %c0_i32_0 : i32, i32
  }
  func.func @transform_5(%arg0: i32) -> (i32, i32, i32) {
    %c0_i32 = arith.constant 0 : i32
    %c0_i32_0 = arith.constant 0 : i32
    %c0_i32_1 = arith.constant 0 : i32
    return %arg0, %c0_i32, %c0_i32_0 : i32, i32, i32
  }
}

</mosaic_0001>

<llo_original>
// kernel: tpu_custom_call.1
$region0: #{tpu_custom_call.1}
  #allocation0 [shape = 'u32[]', space=smem, size = 0x4, offset = 0x4, fixed_abs, tag = 'smem constant byte address 0x4 - core index']
  #allocation1 [shape = 'u32[72,128]{1,0:T(1,128)}', space=vmem, size = 0x9000, scoped, tag = 'internal scratch']
  #allocation2 [shape = 'f32[1,1]{1,0:T(1,128)S(6)}', space=smem, size = 0x200, scoped, tag = 'scoped memory for tpu_custom_call.1']
  %s0 = inlined_call_operand.hbm [shape: f32[16,64], index: 0, kind: input, shape index: {}]
  %s1 = inlined_call_operand.hbm [shape: f32[16,64], index: 1, kind: input, shape index: {}]
  %s2 = inlined_call_operand.hbm [shape: f32[4,64,128], index: 2, kind: input, shape index: {}]
  %s3 = inlined_call_operand.vmem [shape: f32[4,128], index: 3, kind: input, shape index: {}]
  %s4 = inlined_call_operand.<no memory space> [shape: f32[1,1], index: 4, kind: input, shape index: {}]
  %s5 = inlined_call_operand.hbm [shape: f32[2,1,8], index: 5, kind: output, shape index: {}]
  %s6 = sld [smem:[#allocation0]]
  $region65: #{tpu_custom_call.1} parent=0
    _
  %s8 = ssub.s32 1, %s6
  %s9 = scalar_select 0, %s8, %s6
  %10 = sst [smem:[#allocation2]] %s4
  $region1: #{tpu_custom_call.1} parent=0
    #allocation3 [shape = 'u8[8192]{0}', space=vmem, size = 0x2000, scoped, tag = 'input window, operand 0']
    #allocation4 [shape = 's32[2]{0}', space=sflag, size = 0x8, scoped, tag = 'scoped memory for tpu_custom_call.1']
    #allocation5 [shape = 's32[2]{0}', space=sflag, size = 0x8, scoped, tag = 'scoped memory for tpu_custom_call.1']
    #allocation6 [shape = 'u8[8192]{0}', space=vmem, size = 0x2000, scoped, tag = 'input window, operand 1']
    #allocation7 [shape = 's32[2]{0}', space=sflag, size = 0x8, scoped, tag = 'scoped memory for tpu_custom_call.1']
    #allocation8 [shape = 'u8[131072]{0}', space=vmem, size = 0x20000, scoped, tag = 'input window, operand 2, single buffered']
    #allocation9 [shape = 'u8[1024]{0}', space=vmem, size = 0x400, scoped, tag = 'output window, operand 0']
    %11 = vsyncpa [#allocation4], 0
    %s12 = scalar_lea.sflag [#allocation4], 1
    %13 = vsyncpa %s12, 0
    %14 = vsyncpa [#allocation7], 0
    %s15 = scalar_lea.sflag [#allocation7], 1
    %16 = vsyncpa %s15, 0
    %17 = vsyncpa [#allocation5], 0
    %s18 = scalar_lea.sflag [#allocation5], 1
    %19 = vsyncpa %s18, 0
    loop: start=0, step=1, limit=4
    $region2: #{tpu_custom_call.1} parent=1 // loop_pre_header
      _
    $region3: #{tpu_custom_call.1} parent=1 // loop_header
      %s21 = sphi 0, %s25
      %p22 = scmp.ge.s32.totalorder %s21, 4
      %s31 = sphi 0, %s33
      %s34 = sphi 0, %s31
      %s35 = sphi 0, %s34
      %s51 = sphi 0, %s35
      %s57 = sphi 0, %s59
      %s60 = sphi 0, %s57
      %s61 = sphi 0, %s60
      %s77 = sphi 0, %s61
      %s81 = sphi 0, %s81
      %s83 = sphi 0, %s81
      %s84 = sphi 0, %s83
      %s98 = sphi 0, %s84
      %s102 = sphi 0, %s102
      %s104 = sphi 0, %s102
      %s105 = sphi 0, %s104
      %s119 = sphi 0, %s105
      %s123 = sphi 0, %s123
      %s125 = sphi 0, %s123
      %s126 = sphi 0, %s125
      %s140 = sphi 0, %s126
      %s146 = sphi 0, %s148
      %s149 = sphi 0, %s146
      %s150 = sphi 0, %s149
      %s166 = sphi 0, %s150
    $region4: #{tpu_custom_call.1} parent=1 // loop_header_branch
      %24 = sbr.rel (%p22) target = $region8
    $region5: #{tpu_custom_call.1} parent=1 // loop_body
      %s26 = ssub.s32 %s21, 1
      %s27 = ssub.s32 %s21, 2
      %s28 = sadd.s32 %s21, 1
      %s29 = ssub.s32 %s21, %s28
      %p30 = scmp.eq.s32.totalorder %s29, 0
      %s32 = sadd.s32 %s31, 1
      %s33 = scalar_select %p30, %s31, %s32
      %p36 = pneg %p30
      %p37 = scmp.eq.s32.totalorder %s21, 1
      %p38 = por %p36, %p37
      %p39 = scmp.ne.s32.totalorder %s31, %s34
      %p40 = scmp.eq.s32.totalorder %s21, 0
      %p41 = por %p39, %p40
      %p42 = scmp.ne.s32.totalorder %s31, %s34
      %p43 = scmp.eq.s32.totalorder %s26, 1
      %p44 = por %p42, %p43
      %p45 = scmp.ne.s32.totalorder %s34, %s35
      %p46 = scmp.eq.s32.totalorder %s26, 0
      %p47 = por %p45, %p46
      %p48 = scmp.ne.s32.totalorder %s34, %s35
      %p49 = scmp.eq.s32.totalorder %s27, 1
      %p50 = por %p48, %p49
      %p52 = scmp.ne.s32.totalorder %s35, %s51
      %p53 = scmp.eq.s32.totalorder %s27, 0
      %p54 = por %p52, %p53
      %s55 = ssub.s32 %s21, %s28
      %p56 = scmp.eq.s32.totalorder %s55, 0
      %s58 = sadd.s32 %s57, 1
      %s59 = scalar_select %p56, %s57, %s58
      %p62 = pneg %p56
      %p63 = scmp.eq.s32.totalorder %s21, 1
      %p64 = por %p62, %p63
      %p65 = scmp.ne.s32.totalorder %s57, %s60
      %p66 = scmp.eq.s32.totalorder %s21, 0
      %p67 = por %p65, %p66
      %p68 = scmp.ne.s32.totalorder %s57, %s60
      %p69 = scmp.eq.s32.totalorder %s26, 1
      %p70 = por %p68, %p69
      %p71 = scmp.ne.s32.totalorder %s60, %s61
      %p72 = scmp.eq.s32.totalorder %s26, 0
      %p73 = por %p71, %p72
      %p74 = scmp.ne.s32.totalorder %s60, %s61
      %p75 = scmp.eq.s32.totalorder %s27, 1
      %p76 = por %p74, %p75
      %p78 = scmp.ne.s32.totalorder %s61, %s77
      %p79 = scmp.eq.s32.totalorder %s27, 0
      %p80 = por %p78, %p79
      %s82 = sadd.s32 %s81, 1
      %p85 = scmp.eq.s32.totalorder %s21, 1
      %p86 = scmp.ne.s32.totalorder %s81, %s83
      %p87 = scmp.eq.s32.totalorder %s21, 0
      %p88 = por %p86, %p87
      %p89 = scmp.ne.s32.totalorder %s81, %s83
      %p90 = scmp.eq.s32.totalorder %s26, 1
      %p91 = por %p89, %p90
      %p92 = scmp.ne.s32.totalorder %s83, %s84
      %p93 = scmp.eq.s32.totalorder %s26, 0
      %p94 = por %p92, %p93
      %p95 = scmp.ne.s32.totalorder %s83, %s84
      %p96 = scmp.eq.s32.totalorder %s27, 1
      %p97 = por %p95, %p96
      %p99 = scmp.ne.s32.totalorder %s84, %s98
      %p100 = scmp.eq.s32.totalorder %s27, 0
      %p101 = por %p99, %p100
      %s103 = sadd.s32 %s102, 1
      %p106 = scmp.eq.s32.totalorder %s21, 1
      %p107 = scmp.ne.s32.totalorder %s102, %s104
      %p108 = scmp.eq.s32.totalorder %s21, 0
      %p109 = por %p107, %p108
      %p110 = scmp.ne.s32.totalorder %s102, %s104
      %p111 = scmp.eq.s32.totalorder %s26, 1
      %p112 = por %p110, %p111
      %p113 = scmp.ne.s32.totalorder %s104, %s105
      %p114 = scmp.eq.s32.totalorder %s26, 0
      %p115 = por %p113, %p114
      %p116 = scmp.ne.s32.totalorder %s104, %s105
      %p117 = scmp.eq.s32.totalorder %s27, 1
      %p118 = por %p116, %p117
      %p120 = scmp.ne.s32.totalorder %s105, %s119
      %p121 = scmp.eq.s32.totalorder %s27, 0
      %p122 = por %p120, %p121
      %s124 = sadd.s32 %s123, 1
      %p127 = scmp.eq.s32.totalorder %s21, 1
      %p128 = scmp.ne.s32.totalorder %s123, %s125
      %p129 = scmp.eq.s32.totalorder %s21, 0
      %p130 = por %p128, %p129
      %p131 = scmp.ne.s32.totalorder %s123, %s125
      %p132 = scmp.eq.s32.totalorder %s26, 1
      %p133 = por %p131, %p132
      %p134 = scmp.ne.s32.totalorder %s125, %s126
      %p135 = scmp.eq.s32.totalorder %s26, 0
      %p136 = por %p134, %p135
      %p137 = scmp.ne.s32.totalorder %s125, %s126
      %p138 = scmp.eq.s32.totalorder %s27, 1
      %p139 = por %p137, %p138
      %p141 = scmp.ne.s32.totalorder %s126, %s140
      %p142 = scmp.eq.s32.totalorder %s27, 0
      %p143 = por %p141, %p142
      %s144 = ssub.s32 %s21, %s28
      %p145 = scmp.eq.s32.totalorder %s144, 0
      %s147 = sadd.s32 %s146, 1
      %s148 = scalar_select %p145, %s146, %s147
      %p151 = pneg %p145
      %p152 = scmp.eq.s32.totalorder %s21, 1
      %p153 = por %p151, %p152
      %p154 = scmp.ne.s32.totalorder %s146, %s149
      %p155 = scmp.eq.s32.totalorder %s21, 0
      %p156 = por %p154, %p155
      %p157 = scmp.ne.s32.totalorder %s146, %s149
      %p158 = scmp.eq.s32.totalorder %s26, 1
      %p159 = por %p157, %p158
      %p160 = scmp.ne.s32.totalorder %s149, %s150
      %p161 = scmp.eq.s32.totalorder %s26, 0
      %p162 = por %p160, %p161
      %p163 = scmp.ne.s32.totalorder %s149, %s150
      %p164 = scmp.eq.s32.totalorder %s27, 1
      %p165 = por %p163, %p164
      %p167 = scmp.ne.s32.totalorder %s150, %s166
      %p168 = scmp.eq.s32.totalorder %s27, 0
      %p169 = por %p167, %p168
      %p170 = scmp.le.s32.totalorder 1, %s21
      %p171 = scmp.lt.s32.totalorder %s21, 3
      %p172 = pnand %p170, %p171
      %p173 = pneg %p172
      // Predicated region
      $region9: #{tpu_custom_call.1} parent=5 // pred_check
        _
      $region10: #{tpu_custom_call.1} parent=5 // pred_check_branch
        %175 = sbr.rel (%p172) target = $region12
      $region11: #{tpu_custom_call.1} parent=5 // pred_region
        %s176 = ssub.s32 %s21, 1
        // Predicated region
        $region13: #{tpu_custom_call.1} parent=11 // pred_check
          %p177 = pneg %p94
        $region14: #{tpu_custom_call.1} parent=11 // pred_check_branch
          %179 = sbr.rel (%p177) target = $region16
        $region15: #{tpu_custom_call.1} parent=11 // pred_region
          %181 = vsyncadd [#allocation7], 0
          %s182 = sshll.u32 %s2, 4
          %s183 = int_to_ptr.hbm [resolvable:$true] %s182
          %s184 = sshll.u32 [#allocation8], 4
          %s185 = int_to_ptr.vmem [resolvable:$true] %s184
          %190 = dma.hbm_to_vmem [thread:$0]  %s183, 4096, %s185, [#allocation7], 128, 128, 8
        $region16: #{tpu_custom_call.1} parent=11 // pred_fallthru
          _
        // Predicated region
        $region17: #{tpu_custom_call.1} parent=11 // pred_check
          %p191 = pneg %p115
        $region18: #{tpu_custom_call.1} parent=11 // pred_check_branch
          %193 = sbr.rel (%p191) target = $region20
        $region19: #{tpu_custom_call.1} parent=11 // pred_region
          _
        $region20: #{tpu_custom_call.1} parent=11 // pred_fallthru
          _
        // Predicated region
        $region21: #{tpu_custom_call.1} parent=11 // pred_check
          %p194 = pneg %p136
        $region22: #{tpu_custom_call.1} parent=11 // pred_check_branch
          %196 = sbr.rel (%p194) target = $region24
        $region23: #{tpu_custom_call.1} parent=11 // pred_region
          _
        $region24: #{tpu_custom_call.1} parent=11 // pred_fallthru
          _
      $region12: #{tpu_custom_call.1} parent=5 // pred_fallthru
        _
      %p197 = scmp.lt.s32.totalorder %s21, 2
      // Predicated region
      $region25: #{tpu_custom_call.1} parent=5 // pred_check
        %p198 = pneg %p197
      $region26: #{tpu_custom_call.1} parent=5 // pred_check_branch
        %200 = sbr.rel (%p198) target = $region28
      $region27: #{tpu_custom_call.1} parent=5 // pred_region
        // Predicated region
        $region29: #{tpu_custom_call.1} parent=27 // pred_check
          %p201 = pneg %p41
        $region30: #{tpu_custom_call.1} parent=27 // pred_check_branch
          %203 = sbr.rel (%p201) target = $region32
        $region31: #{tpu_custom_call.1} parent=27 // pred_region
          %s204 = sand.u32 %s31, 1
          %s205 = scalar_lea.sflag [#allocation4], %s204
          %s206 = sand.u32 %s31, 1
          %s207 = smul.addr %s206, 8
          %s208 = scalar_lea.vmem [#allocation3], %s207
          %210 = vsyncadd %s205, 0
          %s211 = smul.addr %s21, 8
          %s212 = scalar_lea.hbm %s0, %s211
          %s214 = sshll.u32 %s212, 4
          %s215 = int_to_ptr.hbm [resolvable:$true] %s214
          %s216 = sshll.u32 %s208, 4
          %s217 = int_to_ptr.vmem [resolvable:$true] %s216
          %219 = dma.hbm_to_vmem [thread:$0]  %s215, 128, %s217, %s205
        $region32: #{tpu_custom_call.1} parent=27 // pred_fallthru
          _
        // Predicated region
        $region33: #{tpu_custom_call.1} parent=27 // pred_check
          %p220 = pneg %p67
        $region34: #{tpu_custom_call.1} parent=27 // pred_check_branch
          %222 = sbr.rel (%p220) target = $region36
        $region35: #{tpu_custom_call.1} parent=27 // pred_region
          %s223 = sand.u32 %s21, 1
          %s224 = scalar_lea.sflag [#allocation7], %s223
          %s225 = sand.u32 %s57, 1
          %s226 = smul.addr %s225, 8
          %s227 = scalar_lea.vmem [#allocation6], %s226
          %229 = vsyncadd %s224, 0
          %s230 = smul.addr %s21, 8
          %s231 = scalar_lea.hbm %s1, %s230
          %s233 = sshll.u32 %s231, 4
          %s234 = int_to_ptr.hbm [resolvable:$true] %s233
          %s235 = sshll.u32 %s227, 4
          %s236 = int_to_ptr.vmem [resolvable:$true] %s235
          %238 = dma.hbm_to_vmem [thread:$0]  %s234, 128, %s236, %s224
        $region36: #{tpu_custom_call.1} parent=27 // pred_fallthru
          _
      $region28: #{tpu_custom_call.1} parent=5 // pred_fallthru
        _
      %p239 = scmp.le.s32.totalorder 1, %s21
      %p240 = scmp.lt.s32.totalorder %s21, 3
      %p241 = pnand %p239, %p240
      %p242 = pneg %p241
      // Predicated region
      $region37: #{tpu_custom_call.1} parent=5 // pred_check
        _
      $region38: #{tpu_custom_call.1} parent=5 // pred_check_branch
        %244 = sbr.rel (%p241) target = $region40
      $region39: #{tpu_custom_call.1} parent=5 // pred_region
        %s245 = ssub.s32 %s21, 1
        %s246 = sand.u32 %s34, 1
        %s247 = scalar_lea.sflag [#allocation4], %s246
        %s248 = sand.u32 %s34, 1
        %s249 = smul.addr %s248, 8
        %s250 = scalar_lea.vmem [#allocation3], %s249
        // Predicated region
        $region41: #{tpu_custom_call.1} parent=39 // pred_check
          %p251 = pneg %p47
        $region42: #{tpu_custom_call.1} parent=39 // pred_check_branch
          %253 = sbr.rel (%p251) target = $region44
        $region43: #{tpu_custom_call.1} parent=39 // pred_region
          %255 = dma.done %s247, 128
        $region44: #{tpu_custom_call.1} parent=39 // pred_fallthru
          _
        %s256 = sand.u32 %s26, 1
        %s257 = scalar_lea.sflag [#allocation7], %s256
        %s258 = sand.u32 %s60, 1
        %s259 = smul.addr %s258, 8
        %s260 = scalar_lea.vmem [#allocation6], %s259
        // Predicated region
        $region45: #{tpu_custom_call.1} parent=39 // pred_check
          %p261 = pneg %p73
        $region46: #{tpu_custom_call.1} parent=39 // pred_check_branch
          %263 = sbr.rel (%p261) target = $region48
        $region47: #{tpu_custom_call.1} parent=39 // pred_region
          %265 = dma.done %s257, 128
        $region48: #{tpu_custom_call.1} parent=39 // pred_fallthru
          _
        // Predicated region
        $region49: #{tpu_custom_call.1} parent=39 // pred_check
          %p266 = pneg %p94
        $region50: #{tpu_custom_call.1} parent=39 // pred_check_branch
          %268 = sbr.rel (%p266) target = $region52
        $region51: #{tpu_custom_call.1} parent=39 // pred_region
          %270 = dma.done [#allocation7], 4096
        $region52: #{tpu_custom_call.1} parent=39 // pred_fallthru
          _
        %s271 = sand.u32 %s34, 1
        %s272 = scalar_lea.sflag [#allocation4], %s271
        %s273 = sand.u32 %s34, 1
        %s274 = smul.addr %s273, 8
        %s275 = scalar_lea.vmem [#allocation3], %s274
        %p276 = pneg %p47
        %p277 = pneg %p44
        %s278 = sand.u32 %s26, 1
        %s279 = scalar_lea.sflag [#allocation7], %s278
        %s280 = sand.u32 %s60, 1
        %s281 = smul.addr %s280, 8
        %s282 = scalar_lea.vmem [#allocation6], %s281
        %p283 = pneg %p73
        %p284 = pneg %p70
        %p285 = pneg %p94
        %p286 = pneg %p91
        %p287 = pneg %p115
        %p288 = pneg %p112
        %p289 = pneg %p136
        %p290 = pneg %p133
        %p291 = pneg %p162
        %p292 = pneg %p159
        %s293 = sand.u32 %s149, 1
        %s294 = scalar_lea.sflag [#allocation5], %s293
        %s295 = sand.u32 %s149, 1
        %s296 = scalar_lea.vmem [#allocation9], %s295
        %v297 = vld [vmem:[%s250] sm:$0xff]
        %v298 = vld [vmem:[%s260] sm:$0xff]
        %v299 = vld [vmem:[#allocation8] sm:$0xff]
        %v300 = vld [vmem:[#allocation8 + $0x8] sm:$0xff]
        %v301 = vld [vmem:[#allocation8 + $0x10] sm:$0xff]
        %v302 = vld [vmem:[#allocation8 + $0x18] sm:$0xff]
        %v303 = vld [vmem:[#allocation8 + $0x20] sm:$0xff]
        %v304 = vld [vmem:[#allocation8 + $0x28] sm:$0xff]
        %v305 = vld [vmem:[#allocation8 + $0x30] sm:$0xff]
        %v306 = vld [vmem:[#allocation8 + $0x38] sm:$0xff]
        %s307 = scalar_lea.vmem [#allocation8], 64
        %v308 = vld [vmem:[%s307] sm:$0xff]
        %v309 = vld [vmem:[%s307 + $0x8] sm:$0xff]
        %v310 = vld [vmem:[%s307 + $0x10] sm:$0xff]
        %v311 = vld [vmem:[%s307 + $0x18] sm:$0xff]
        %v312 = vld [vmem:[%s307 + $0x20] sm:$0xff]
        %v313 = vld [vmem:[%s307 + $0x28] sm:$0xff]
        %v314 = vld [vmem:[%s307 + $0x30] sm:$0xff]
        %v315 = vld [vmem:[%s307 + $0x38] sm:$0xff]
        %vm316 = vcmask 523264
        %v318 = vsel %vm316, %v298, 0
        %320 = vmatpush.msra.mxu0 0.0
        %321 = vmatpush.msra.mxu0 0.0
        %322 = vmatpush.msra.mxu0 0.0
        %323 = vmatpush.msra.mxu0 0.0
        %324 = vmatpush.msra.mxu0 0.0
        %325 = vmatpush.msra.mxu0 0.0
        %326 = vmatpush.msra.mxu0 0.0
        %327 = vmatpush.msra.mxu0 0.0
        %328 = vmatpush.msra.mxu0 %v315
        %329 = vmatpush.msra.mxu0 %v314
        %330 = vmatpush.msra.mxu0 %v313
        %331 = vmatpush.msra.mxu0 %v312
        %332 = vmatpush.msra.mxu0 %v311
        %333 = vmatpush.msra.mxu0 %v310
        %334 = vmatpush.msra.mxu0 %v309
        %335 = vmatpush.msra.mxu0 %v308
        %336 = vmatmul.f32.gmra.mxu0 %v318
        %v337 = vpop.f32.mrf.mxu0
        %v338 = vadd.f32 0.0, %v337
        %339 = vdwg.mxu0
        %v341 = vsel %vm316, %v297, 0
        %343 = vmatpush.msra.mxu0 0.0
        %344 = vmatpush.msra.mxu0 0.0
        %345 = vmatpush.msra.mxu0 0.0
        %346 = vmatpush.msra.mxu0 0.0
        %347 = vmatpush.msra.mxu0 0.0
        %348 = vmatpush.msra.mxu0 0.0
        %349 = vmatpush.msra.mxu0 0.0
        %350 = vmatpush.msra.mxu0 0.0
        %351 = vmatpush.msra.mxu0 %v306
        %352 = vmatpush.msra.mxu0 %v305
        %353 = vmatpush.msra.mxu0 %v304
        %354 = vmatpush.msra.mxu0 %v303
        %355 = vmatpush.msra.mxu0 %v302
        %356 = vmatpush.msra.mxu0 %v301
        %357 = vmatpush.msra.mxu0 %v300
        %358 = vmatpush.msra.mxu0 %v299
        %359 = vmatmul.f32.gmra.mxu0 %v341
        %v360 = vpop.f32.mrf.mxu0
        %v361 = vadd.f32 %v338, %v360
        %362 = vdwg.mxu0
        %v363 = vsub.f32 %v297, %v298
        %v364 = vand.u32 2147483647, %v363
        %s365 = scalar_lea.vmem [#allocation8], 128
        %v366 = vld [vmem:[%s365] sm:$0xff]
        %v367 = vld [vmem:[%s365 + $0x8] sm:$0xff]
        %v368 = vld [vmem:[%s365 + $0x10] sm:$0xff]
        %v369 = vld [vmem:[%s365 + $0x18] sm:$0xff]
        %v370 = vld [vmem:[%s365 + $0x20] sm:$0xff]
        %v371 = vld [vmem:[%s365 + $0x28] sm:$0xff]
        %v372 = vld [vmem:[%s365 + $0x30] sm:$0xff]
        %v373 = vld [vmem:[%s365 + $0x38] sm:$0xff]
        %v375 = vsel %vm316, %v364, 0
        %377 = vmatpush.msra.mxu0 0.0
        %378 = vmatpush.msra.mxu0 0.0
        %379 = vmatpush.msra.mxu0 0.0
        %380 = vmatpush.msra.mxu0 0.0
        %381 = vmatpush.msra.mxu0 0.0
        %382 = vmatpush.msra.mxu0 0.0
        %383 = vmatpush.msra.mxu0 0.0
        %384 = vmatpush.msra.mxu0 0.0
        %385 = vmatpush.msra.mxu0 %v373
        %386 = vmatpush.msra.mxu0 %v372
        %387 = vmatpush.msra.mxu0 %v371
        %388 = vmatpush.msra.mxu0 %v370
        %389 = vmatpush.msra.mxu0 %v369
        %390 = vmatpush.msra.mxu0 %v368
        %391 = vmatpush.msra.mxu0 %v367
        %392 = vmatpush.msra.mxu0 %v366
        %393 = vmatmul.f32.gmra.mxu0 %v375
        %v394 = vpop.f32.mrf.mxu0
        %v395 = vadd.f32 0.0, %v394
        %396 = vdwg.mxu0
        %v397 = vadd.f32 %v361, %v395
        %v398 = vmul.f32 %v297, %v298
        %s399 = scalar_lea.vmem [#allocation8], 192
        %v400 = vld [vmem:[%s399] sm:$0xff]
        %v401 = vld [vmem:[%s399 + $0x8] sm:$0xff]
        %v402 = vld [vmem:[%s399 + $0x10] sm:$0xff]
        %v403 = vld [vmem:[%s399 + $0x18] sm:$0xff]
        %v404 = vld [vmem:[%s399 + $0x20] sm:$0xff]
        %v405 = vld [vmem:[%s399 + $0x28] sm:$0xff]
        %v406 = vld [vmem:[%s399 + $0x30] sm:$0xff]
        %v407 = vld [vmem:[%s399 + $0x38] sm:$0xff]
        %v409 = vsel %vm316, %v398, 0
        %411 = vmatpush.msra.mxu0 0.0
        %412 = vmatpush.msra.mxu0 0.0
        %413 = vmatpush.msra.mxu0 0.0
        %414 = vmatpush.msra.mxu0 0.0
        %415 = vmatpush.msra.mxu0 0.0
        %416 = vmatpush.msra.mxu0 0.0
        %417 = vmatpush.msra.mxu0 0.0
        %418 = vmatpush.msra.mxu0 0.0
        %419 = vmatpush.msra.mxu0 %v407
        %420 = vmatpush.msra.mxu0 %v406
        %421 = vmatpush.msra.mxu0 %v405
        %422 = vmatpush.msra.mxu0 %v404
        %423 = vmatpush.msra.mxu0 %v403
        %424 = vmatpush.msra.mxu0 %v402
        %425 = vmatpush.msra.mxu0 %v401
        %426 = vmatpush.msra.mxu0 %v400
        %427 = vmatmul.f32.gmra.mxu0 %v409
        %v428 = vpop.f32.mrf.mxu0
        %v429 = vadd.f32 0.0, %v428
        %430 = vdwg.mxu0
        %v431 = vadd.f32 %v397, %v429
        %v432 = vld [vmem:[%s3] sm:$0x1]
        %v433 = vperm.slane %v432, 0
        %v434 = vadd.f32 %v431, %v433
        %435 = vadd.xlane.f32.xlu0 %v434
        %v436 = vpop.xlane.xlu0 %435
        %v437 = vrcp.pop 128.0
        %v438 = vmul.f32 128.0, %v437
        %v439 = vsub.f32 1.0, %v438
        %v440 = vmul.f32 %v437, %v439
        %v441 = vadd.f32 %v437, %v440
        %vm442 = vweird.f32 %v437
        %v443 = vsel %vm442, %v437, %v441
        %v444 = vmul.f32 %v436, %v443
        %v445 = vsub.f32 %v434, %v444
        %v446 = vmul.f32 %v445, %v445
        %447 = vadd.xlane.f32.xlu0 %v446
        %v448 = vpop.xlane.xlu0 %447
        %v449 = vmul.f32 %v448, %v443
        %v450 = vadd.f32 %v449, 1e-05
        %v451 = vrsqrt.pop %v450
        %v452 = vmul.f32 %v451, %v450
        %v453 = vmul.f32 %v452, %v451
        %v454 = vmul.f32 0.5, %v453
        %v455 = vsub.f32 1.5, %v454
        %v456 = vmul.f32 %v451, %v455
        %vm457 = vweird.f32 %v450
        %vm458 = vweird.f32 %v451
        %vm459 = vmor %vm457, %vm458
        %v460 = vsel %vm459, %v451, %v456
        %v461 = vld [vmem:[%s3 + $0x1] sm:$0x1]
        %v462 = vperm.slane %v461, 0
        %v463 = vmul.f32 %v460, %v462
        %v464 = vmul.f32 %v445, %v463
        %v465 = vld [vmem:[%s3 + $0x2] sm:$0x1]
        %v466 = vperm.slane %v465, 0
        %v467 = vadd.f32 %v464, %v466
        %v468 = vmax.f32 %v467, 0.0
        %v469 = vld [vmem:[%s3 + $0x3] sm:$0x1]
        %s470 = sld [smem:[#allocation2]]
        %v471 = vstv %s470
        %472 = vmatpush.xpose.msra.mxu0 0.0
        %473 = vmatpush.xpose.msra.mxu0 0.0
        %474 = vmatpush.xpose.msra.mxu0 0.0
        %475 = vmatpush.xpose.msra.mxu0 0.0
        %476 = vmatpush.xpose.msra.mxu0 0.0
        %477 = vmatpush.xpose.msra.mxu0 0.0
        %478 = vmatpush.xpose.msra.mxu0 0.0
        %479 = vmatpush.xpose.msra.mxu0 0.0
        %480 = vmatpush.xpose.msra.mxu0 0.0
        %481 = vmatpush.xpose.msra.mxu0 0.0
        %482 = vmatpush.xpose.msra.mxu0 0.0
        %483 = vmatpush.xpose.msra.mxu0 0.0
        %484 = vmatpush.xpose.msra.mxu0 0.0
        %485 = vmatpush.xpose.msra.mxu0 0.0
        %486 = vmatpush.xpose.msra.mxu0 0.0
        %487 = vmatpush.xpose.msra.mxu0 %v468
        %488 = vmatmul.f32.gmra.mxu0 %v469
        %v489 = vpop.f32.mrf.mxu0
        %v490 = vadd.f32 %v471, %v489
        %491 = vdwg.mxu0
        %v492 = vxor.u32 %v490, 2147483648
        %v493 = vmul.f32 %v492, 1.442695
        %v494 = vpow.pop %v493
        %v495 = vadd.f32 %v494, 1.0
        %v496 = vrcp.pop %v495
        %v497 = vmul.f32 %v495, %v496
        %v498 = vsub.f32 1.0, %v497
        %v499 = vmul.f32 %v496, %v498
        %v500 = vadd.f32 %v496, %v499
        %vm501 = vweird.f32 %v495
        %vm502 = vweird.f32 %v496
        %vm503 = vmor %vm501, %vm502
        %v504 = vsel %vm503, %v496, %v500
        %v505 = vand.u32 2147483647, %v495
        %vm506 = vcmp.eq.f32.partialorder %v505, 8.507059e+37
        %v507 = vand.u32 %v495, 2147483648
        %v508 = vor.u32 1.1754944e-38, %v507
        %v509 = vsel %vm506, %v508, %v504
        %v510 = vmul.f32 1.0, %v509
        %vm511 = vcmask 57344
        %512 = vst.msk [vmem:[%s296] sm:$0x1] %vm511, %v510
        %s513 = sand.u32 %s149, 1
        %s514 = scalar_lea.sflag [#allocation5], %s513
        %s515 = sand.u32 %s149, 1
        %s516 = scalar_lea.vmem [#allocation9], %s515
        // Predicated region
        $region53: #{tpu_custom_call.1} parent=39 // pred_check
          %p517 = pneg %p159
        $region54: #{tpu_custom_call.1} parent=39 // pred_check_branch
          %519 = sbr.rel (%p517) target = $region56
        $region55: #{tpu_custom_call.1} parent=39 // pred_region
          %521 = vsyncadd %s514, 0
          %s522 = scalar_lea.hbm %s5, %s26
          %s524 = sshll.u32 %s516, 4
          %s525 = int_to_ptr.vmem [resolvable:$true] %s524
          %s526 = sshll.u32 %s522, 4
          %s527 = int_to_ptr.hbm [resolvable:$true] %s526
          %529 = dma.vmem_to_hbm [thread:$0]  %s525, 16, %s527, %s514
        $region56: #{tpu_custom_call.1} parent=39 // pred_fallthru
          _
      $region40: #{tpu_custom_call.1} parent=5 // pred_fallthru
        _
      %p530 = scmp.le.s32.totalorder 2, %s21
      // Predicated region
      $region57: #{tpu_custom_call.1} parent=5 // pred_check
        %p531 = pneg %p530
      $region58: #{tpu_custom_call.1} parent=5 // pred_check_branch
        %533 = sbr.rel (%p531) target = $region60
      $region59: #{tpu_custom_call.1} parent=5 // pred_region
        %s534 = ssub.s32 %s21, 2
        // Predicated region
        $region61: #{tpu_custom_call.1} parent=59 // pred_check
          %p535 = pneg %p165
        $region62: #{tpu_custom_call.1} parent=59 // pred_check_branch
          %537 = sbr.rel (%p535) target = $region64
        $region63: #{tpu_custom_call.1} parent=59 // pred_region
          %s538 = sand.u32 %s150, 1
          %s539 = scalar_lea.sflag [#allocation5], %s538
          %s540 = sand.u32 %s150, 1
          %s541 = scalar_lea.vmem [#allocation9], %s540
          %543 = dma.done %s539, 16
        $region64: #{tpu_custom_call.1} parent=59 // pred_fallthru
          _
      $region60: #{tpu_custom_call.1} parent=5 // pred_fallthru
        _
    $region6: #{tpu_custom_call.1} parent=1 // loop_footer
      %s25 = sadd.s32 1, %s21
    $region7: #{tpu_custom_call.1} parent=1 // loop_footer_branch
      %20 = sbr.rel target = $region3
    $region8: #{tpu_custom_call.1} parent=1 // loop_exit
      _
    %544 = vsyncpa [#allocation4], 1
    %s545 = scalar_lea.sflag [#allocation4], 1
    %546 = vsyncpa %s545, 1
    %547 = vsyncpa [#allocation7], 1
    %s548 = scalar_lea.sflag [#allocation7], 1
    %549 = vsyncpa %s548, 1
    %550 = vsyncpa [#allocation5], 1
    %s551 = scalar_lea.sflag [#allocation5], 1
    %552 = vsyncpa %s551, 1

</llo_original>
